<compile_context>
chip_gen: v6e
topology: v6e:2x2x1
jax: 0.10.0
libtpu: 0.0.40
codegen_flags: <defaults>
</compile_context>

<pallas_src>
import functools

import jax
import jax.numpy as jnp
from jax.experimental import pallas as pl
from jax.experimental.pallas import tpu as pltpu

_NEG_LARGE = -1e30


def _round_up(x, m):
    return (x + m - 1) // m * m


def _row_mult(dtype):
    # bf16 packs 16 rows per vreg (sublane packing); f32 packs 8.
    return 16 if dtype == jnp.bfloat16 else 8


def _vmem_budget_bytes():
    # Leave headroom below physical VMEM (64 MiB on v7x, 128 MiB on v5e/v6e).
    try:
        cap = int(pltpu.get_tpu_info().vmem_capacity_bytes)
    except Exception:
        cap = 64 * 1024 * 1024
    return max(32 * 1024 * 1024, min(3 * cap // 4, 96 * 1024 * 1024))


_VMEM_LIMIT = _vmem_budget_bytes()
# Bigger row tiles on 128-MiB parts (v5e/v6e); stay conservative on v7x.
_LINEAR_TM_CAP = 1024 if _VMEM_LIMIT >= 96 * 1024 * 1024 else 256


# --------------------------------------------------------------------------
# Linear kernels: y = x @ Wt + b   (Wt already transposed to (Cin, Cout))
# --------------------------------------------------------------------------
def _linear_kernel(x_ref, wt_ref, b_ref, o_ref):
    # Native-dtype MXU matmul, f32 accumulate (no operand upcast).
    y = jnp.dot(x_ref[...], wt_ref[...], preferred_element_type=jnp.float32)
    o_ref[...] = (y + b_ref[...].astype(jnp.float32)).astype(o_ref.dtype)


def _split_linear_kernel(x_ref, wt_ref, b_ref, o_ref, *, n_split, width):
    # Fused projection; output written as (n_split, tm, width) so downstream
    # kernels can address q/k/v through index maps (no HBM slice copies).
    y = jnp.dot(x_ref[...], wt_ref[...], preferred_element_type=jnp.float32)
    y = (y + b_ref[...].astype(jnp.float32)).astype(o_ref.dtype)
    for s in range(n_split):
        o_ref[s] = y[:, s * width:(s + 1) * width]


def _pick_tm(rows, cin, cout, itemsize, row_mult):
    tm = min(_LINEAR_TM_CAP, _round_up(rows, row_mult))
    while tm > row_mult:
        # double-buffered x/out tiles + resident weight/bias
        need = (2 * tm * (cin + cout) + cin * cout + cout) * itemsize
        if need <= _VMEM_LIMIT // 2:
            break
        tm = _round_up(tm // 2, row_mult)
    return tm


def _linear_call(x2, wt, b2, *, n_split, single_buffer_weights):
    rows, cin = x2.shape
    cout = wt.shape[1]
    width = cout // n_split
    row_mult = _row_mult(x2.dtype)
    tm = _pick_tm(rows, cin, cout, x2.dtype.itemsize, row_mult)
    rows_p = _round_up(rows, tm)
    if rows_p != rows:
        x2 = jnp.pad(x2, ((0, rows_p - rows), (0, 0)))
    grid = (rows_p // tm,)

    if n_split == 1:
        kernel = _linear_kernel
        out_shape = jax.ShapeDtypeStruct((rows_p, cout), x2.dtype)
        out_spec = pl.BlockSpec((tm, cout), lambda i: (i, 0))
    else:
        kernel = functools.partial(_split_linear_kernel,
                                   n_split=n_split, width=width)
        out_shape = jax.ShapeDtypeStruct((n_split, rows_p, width), x2.dtype)
        out_spec = pl.BlockSpec((n_split, tm, width), lambda i: (0, i, 0))

    # Constant-index weight/bias blocks: single buffer frees VMEM for row tiles.
    res = {"pipeline_mode": pl.Buffered(1)} if single_buffer_weights else {}
    out = pl.pallas_call(
        kernel,
        out_shape=out_shape,
        grid_spec=pltpu.PrefetchScalarGridSpec(
            num_scalar_prefetch=0,
            grid=grid,
            in_specs=[
                pl.BlockSpec((tm, cin), lambda i: (i, 0)),
                pl.BlockSpec((cin, cout), lambda i: (0, 0), **res),
                pl.BlockSpec((1, cout), lambda i: (0, 0), **res),
            ],
            out_specs=out_spec,
        ),
        compiler_params=pltpu.CompilerParams(
            dimension_semantics=("parallel",),
            vmem_limit_bytes=_VMEM_LIMIT,
        ),
    )(x2, wt, b2)
    return out, rows_p


def linear(x2, wt, b, *, n_split=1):
    """y = x2 @ wt + b.  n_split > 1 returns (n_split, rows, cout // n_split)."""
    rows = x2.shape[0]
    b2 = b.reshape(1, -1)
    try:
        out, rows_p = _linear_call(x2, wt, b2, n_split=n_split,
                                   single_buffer_weights=True)
    except Exception:
        # pipeline_mode=pl.Buffered(1) not available on this JAX: use default
        # (double-buffered) resident weights instead.
        out, rows_p = _linear_call(x2, wt, b2, n_split=n_split,
                                   single_buffer_weights=False)
    if rows_p != rows:
        out = out[:, :rows] if n_split > 1 else out[:rows]
    return out


# --------------------------------------------------------------------------
# Flash-style multi-head attention on lane-dense (.., N, C) blocks.
# --------------------------------------------------------------------------
def _mha_kernel(q_ref, k_ref, v_ref, o_ref, m_ref, l_ref, acc_ref, *,
                num_heads, head_dim, kv_len, block_k, masked):
    ki = pl.program_id(2)

    @pl.when(ki == 0)
    def _():
        m_ref[...] = jnp.full_like(m_ref, -jnp.inf)
        l_ref[...] = jnp.zeros_like(l_ref)
        acc_ref[...] = jnp.zeros_like(acc_ref)

    q = q_ref[0, 0]                  # (tq, C); hd**-0.5 already folded into Wq/bq
    k = k_ref[0, 0]                  # (tk, C)
    v = v_ref[0, 0]                  # (tk, C)

    if masked:
        col = ki * block_k + jax.lax.broadcasted_iota(
            jnp.int32, (q.shape[0], block_k), 1)
        valid = col < kv_len

    for h in range(num_heads):
        lo = h * head_dim
        hi = lo + head_dim
        # q @ k^T per head, native dtype in / f32 accumulate out.
        s = jax.lax.dot_general(
            q[:, lo:hi], k[:, lo:hi], (((1,), (1,)), ((), ())),
            preferred_element_type=jnp.float32)            # (tq, tk) f32
        if masked:
            s = jnp.where(valid, s, _NEG_LARGE)

        m_prev = m_ref[:, h:h + 1]
        l_prev = l_ref[:, h:h + 1]
        m_new = jnp.maximum(m_prev, jnp.max(s, axis=-1, keepdims=True))
        alpha = jnp.exp(m_prev - m_new)
        p = jnp.exp(s - m_new)
        l_ref[:, h:h + 1] = alpha * l_prev + jnp.sum(p, axis=-1, keepdims=True)
        # p cast to input dtype (matches .type_as(x)); PV accumulates in f32.
        acc_ref[:, lo:hi] = alpha * acc_ref[:, lo:hi] + jnp.dot(
            p.astype(v.dtype), v[:, lo:hi], preferred_element_type=jnp.float32)
        m_ref[:, h:h + 1] = m_new

    @pl.when(ki == pl.num_programs(2) - 1)
    def _():
        inv = pl.reciprocal(l_ref[...], approx=True)       # EUP slot, ~free
        parts = []
        for h in range(num_heads):
            lo = h * head_dim
            parts.append(acc_ref[:, lo:lo + head_dim] * inv[:, h:h + 1])
        # Single lane-dense (tq, C) store; heads already merged.
        o_ref[0] = jnp.concatenate(parts, axis=-1).astype(o_ref.dtype)


def mha(q_arr, kv_arr, *, num_heads, q_idx, k_idx, v_idx,
        tq_cap=256, tk_cap=512):
    """q_arr: (Sq, B, Nq, C) packed projections; kv_arr: (Sk, B, Nk, C).

    q_idx / k_idx / v_idx select which packed slice holds q / k / v, so for
    self-attention the fused (3, B, N, C) QKV slab is passed as both arguments
    and addressed purely through BlockSpec index maps.  Output is (B, Nq, C)
    with heads already merged (lane-dense C)."""
    _, B, Nq, C = q_arr.shape
    Nk = kv_arr.shape[2]
    hd = C // num_heads
    dt = q_arr.dtype
    row_mult = _row_mult(dt)

    tq = min(tq_cap, _round_up(Nq, row_mult))
    tk = min(tk_cap, _round_up(Nk, row_mult))
    nq_p = _round_up(Nq, tq)
    nk_p = _round_up(Nk, tk)
    if nq_p != Nq:
        q_arr = jnp.pad(q_arr, ((0, 0), (0, 0), (0, nq_p - Nq), (0, 0)))
    if nk_p != Nk:
        kv_arr = jnp.pad(kv_arr, ((0, 0), (0, 0), (0, nk_p - Nk), (0, 0)))

    kern = functools.partial(_mha_kernel, num_heads=num_heads, head_dim=hd,
                             kv_len=Nk, block_k=tk, masked=(nk_p != Nk))
    grid = (B, nq_p // tq, nk_p // tk)

    out = pl.pallas_call(
        kern,
        out_shape=jax.ShapeDtypeStruct((B, nq_p, C), dt),
        grid_spec=pltpu.PrefetchScalarGridSpec(
            num_scalar_prefetch=0,
            grid=grid,
            in_specs=[
                pl.BlockSpec((1, 1, tq, C), lambda b, qi, ki: (q_idx, b, qi, 0)),
                pl.BlockSpec((1, 1, tk, C), lambda b, qi, ki: (k_idx, b, ki, 0)),
                pl.BlockSpec((1, 1, tk, C), lambda b, qi, ki: (v_idx, b, ki, 0)),
            ],
            out_specs=pl.BlockSpec((1, tq, C), lambda b, qi, ki: (b, qi, 0)),
            scratch_shapes=[
                pltpu.VMEM((tq, num_heads), jnp.float32),   # running max
                pltpu.VMEM((tq, num_heads), jnp.float32),   # running denom
                pltpu.VMEM((tq, C), jnp.float32),           # un-normalized out
            ],
        ),
        compiler_params=pltpu.CompilerParams(
            dimension_semantics=("parallel", "parallel", "arbitrary"),
            vmem_limit_bytes=_VMEM_LIMIT,
        ),
    )(q_arr, kv_arr, kv_arr)
    return out[:, :Nq] if nq_p != Nq else out


# --------------------------------------------------------------------------
# Module forward
# --------------------------------------------------------------------------
def prepare_params(params, *, num_heads, dtype=jnp.float32,
                   cross_attention=False):
    """One-time prep outside the hot path: transpose weights to (Cin, Cout),
    fuse the projections, and fold the hd**-0.5 scale into Wq/bq."""
    wq, bq = params["q"]
    wk, bk = params["k"]
    wv, bv = params["v"]
    wp, bp = params["proj"]
    C = wq.shape[0]
    scale = (C // num_heads) ** -0.5

    prepared = {"proj_wt": wp.T.astype(dtype), "proj_b": bp.astype(dtype)}
    if cross_attention:
        prepared["q_wt"] = (wq.T * scale).astype(dtype)
        prepared["q_b"] = (bq * scale).astype(dtype)
        prepared["kv_wt"] = jnp.concatenate([wk.T, wv.T], axis=1).astype(dtype)
        prepared["kv_b"] = jnp.concatenate([bk, bv]).astype(dtype)
    else:
        prepared["qkv_wt"] = jnp.concatenate(
            [wq.T * scale, wk.T, wv.T], axis=1).astype(dtype)
        prepared["qkv_b"] = jnp.concatenate([bq * scale, bk, bv]).astype(dtype)
    return prepared


def attention_fusion(x, prepared, *, num_heads, cross_attention=False, kv=None,
                     attention_mask=None):
    """x: (B, N, C) -> (B, N, C).  attn_drop / proj_drop are identity (p=0)."""
    # TODO(synk): additive attention_mask is not plumbed into the flash kernel
    # (module default is None).
    assert attention_mask is None
    B, N, C = x.shape
    assert C % num_heads == 0

    x2 = x.reshape(B * N, C)

    if cross_attention:
        assert kv is not None
        Bk, M, Ck = kv.shape
        assert Bk == B and Ck == C
        q4 = linear(x2, prepared["q_wt"], prepared["q_b"]).reshape(1, B, N, C)
        kv4 = linear(kv.reshape(B * M, C), prepared["kv_wt"], prepared["kv_b"],
                     n_split=2).reshape(2, B, M, C)
        o3 = mha(q4, kv4, num_heads=num_heads, q_idx=0, k_idx=0, v_idx=1)
    else:
        qkv4 = linear(x2, prepared["qkv_wt"], prepared["qkv_b"],
                      n_split=3).reshape(3, B, N, C)
        o3 = mha(qkv4, qkv4, num_heads=num_heads, q_idx=0, k_idx=1, v_idx=2)

    out = linear(o3.reshape(B * N, C), prepared["proj_wt"], prepared["proj_b"])
    return out.reshape(B, N, C)


# --------------------------------------------------------------------------
# Pure-JAX reference (mirrors the PyTorch module)
# --------------------------------------------------------------------------
def attention_fusion_ref(x, params, *, num_heads):
    B, N, C = x.shape
    hd = C // num_heads
    scale = hd ** -0.5
    wq, bq = params["q"]
    wk, bk = params["k"]
    wv, bv = params["v"]
    wp, bp = params["proj"]

    q = x @ wq.T + bq
    k = x @ wk.T + bk
    v = x @ wv.T + bv
    q = q.reshape(B, N, num_heads, hd).transpose(0, 2, 1, 3) * scale
    k = k.reshape(B, N, num_heads, hd).transpose(0, 2, 1, 3)
    v = v.reshape(B, N, num_heads, hd).transpose(0, 2, 1, 3)

    attn = jnp.einsum("bhqd,bhkd->bhqk",
                      q.astype(jnp.float32), k.astype(jnp.float32))
    attn = jax.nn.softmax(attn, axis=-1).astype(x.dtype)
    o = jnp.einsum("bhqk,bhkd->bhqd", attn, v)
    o = o.transpose(0, 2, 1, 3).reshape(B, N, C)
    return o @ wp.T + bp


def _init_linear(key, cin, cout):
    k1, k2 = jax.random.split(key)
    bound = 1.0 / (cin ** 0.5)
    w = jax.random.uniform(k1, (cout, cin), jnp.float32, -bound, bound)
    b = jax.random.uniform(k2, (cout,), jnp.float32, -bound, bound)
    return w, b


if __name__ == "__main__":
    B, N, C, H = 2, 8, 32, 8

    key = jax.random.PRNGKey(0)
    kx, kq, kk, kv_, kp = jax.random.split(key, 5)

    x = jax.random.normal(kx, (B, N, C), dtype=jnp.float32)
    params = {
        "q": _init_linear(kq, C, C),
        "k": _init_linear(kk, C, C),
        "v": _init_linear(kv_, C, C),
        "proj": _init_linear(kp, C, C),
    }

    prepared = prepare_params(params, num_heads=H, dtype=x.dtype)
    out = attention_fusion(x, prepared, num_heads=H)
    out = jax.block_until_ready(out)

    ref = attention_fusion_ref(x, params, num_heads=H)
    assert out.shape == (B, N, C)
    # Tolerance accounts for the EUP approx reciprocal in the softmax denom.
    assert jnp.allclose(out, ref, atol=2e-3, rtol=2e-3), "mismatch vs reference"

    print("KERNEL_OK")
</pallas_src>

<mosaic_0001>
module attributes {stable_mosaic.version = 11 : i64} {
  func.func @_split_linear_kernel(%arg0: i32, %arg1: memref<16x32xf32, #tpu.memory_space<vmem>>, %arg2: memref<32x96xf32, #tpu.memory_space<vmem>>, %arg3: memref<1x96xf32, #tpu.memory_space<vmem>>, %arg4: memref<3x16x32xf32, #tpu.memory_space<vmem>>) attributes {dimension_semantics = [#tpu.dimension_semantics<parallel>], iteration_bounds = array<i64: 1>, scalar_prefetch = 0 : i64, scratch_operands = 0 : i64, tpu.core_type = #tpu.core_type<tc>, window_params = [{transform_indices = @transform_0, window_bounds = array<i64: 16, 32>}, {pipeline_mode = #tpu.pipeline_mode<synchronous>, transform_indices = @transform_1, window_bounds = array<i64: 32, 96>}, {pipeline_mode = #tpu.pipeline_mode<synchronous>, transform_indices = @transform_2, window_bounds = array<i64: 1, 96>}, {transform_indices = @transform_3, window_bounds = array<i64: 3, 16, 32>}]} {
    %c0 = arith.constant 0 : index
    %c0_0 = arith.constant 0 : index
    %0 = vector.load %arg1[%c0, %c0_0] : memref<16x32xf32, #tpu.memory_space<vmem>>, vector<16x32xf32>
    %c0_1 = arith.constant 0 : index
    %c0_2 = arith.constant 0 : index
    %1 = vector.load %arg2[%c0_1, %c0_2] : memref<32x96xf32, #tpu.memory_space<vmem>>, vector<32x96xf32>
    %cst = arith.constant dense<0.000000e+00> : vector<16x96xf32>
    %2 = tpu.matmul %0, %1, %cst {dimension_numbers = #tpu.dot_dimension_numbers<[1], [0], [0], [1], [0, 0, 1, 1], [], []>} : vector<16x32xf32>, vector<32x96xf32>, vector<16x96xf32> -> vector<16x96xf32>
    %c0_3 = arith.constant 0 : index
    %c0_4 = arith.constant 0 : index
    %3 = vector.load %arg3[%c0_3, %c0_4] : memref<1x96xf32, #tpu.memory_space<vmem>>, vector<1x96xf32>
    %4 = vector.broadcast %3 : vector<1x96xf32> to vector<16x96xf32>
    %5 = arith.addf %2, %4 : vector<16x96xf32>
    %6 = vector.extract_strided_slice %5 {offsets = [0, 0], sizes = [16, 32], strides = [1, 1]} : vector<16x96xf32> to vector<16x32xf32>
    %c0_5 = arith.constant 0 : index
    %c0_6 = arith.constant 0 : index
    %c0_7 = arith.constant 0 : index
    %7 = vector.load %arg4[%c0_5, %c0_6, %c0_7] : memref<3x16x32xf32, #tpu.memory_space<vmem>>, vector<1x16x32xf32>
    %8 = vector.shape_cast %7 : vector<1x16x32xf32> to vector<16x32xf32>
    %9 = vector.shape_cast %6 : vector<16x32xf32> to vector<1x16x32xf32>
    tpu.vector_store %arg4[%c0_5, %c0_6, %c0_7], %9 {strides = array<i32>} : memref<3x16x32xf32, #tpu.memory_space<vmem>>, vector<1x16x32xf32>,
    %10 = vector.extract_strided_slice %5 {offsets = [0, 32], sizes = [16, 32], strides = [1, 1]} : vector<16x96xf32> to vector<16x32xf32>
    %c1 = arith.constant 1 : index
    %c0_8 = arith.constant 0 : index
    %c0_9 = arith.constant 0 : index
    %11 = vector.load %arg4[%c1, %c0_8, %c0_9] : memref<3x16x32xf32, #tpu.memory_space<vmem>>, vector<1x16x32xf32>
    %12 = vector.shape_cast %11 : vector<1x16x32xf32> to vector<16x32xf32>
    %13 = vector.shape_cast %10 : vector<16x32xf32> to vector<1x16x32xf32>
    tpu.vector_store %arg4[%c1, %c0_8, %c0_9], %13 {strides = array<i32>} : memref<3x16x32xf32, #tpu.memory_space<vmem>>, vector<1x16x32xf32>,
    %14 = vector.extract_strided_slice %5 {offsets = [0, 64], sizes = [16, 32], strides = [1, 1]} : vector<16x96xf32> to vector<16x32xf32>
    %c2 = arith.constant 2 : index
    %c0_10 = arith.constant 0 : index
    %c0_11 = arith.constant 0 : index
    %15 = vector.load %arg4[%c2, %c0_10, %c0_11] : memref<3x16x32xf32, #tpu.memory_space<vmem>>, vector<1x16x32xf32>
    %16 = vector.shape_cast %15 : vector<1x16x32xf32> to vector<16x32xf32>
    %17 = vector.shape_cast %14 : vector<16x32xf32> to vector<1x16x32xf32>
    tpu.vector_store %arg4[%c2, %c0_10, %c0_11], %17 {strides = array<i32>} : memref<3x16x32xf32, #tpu.memory_space<vmem>>, vector<1x16x32xf32>,
    return
  }
  func.func @transform_0(%arg0: i32) -> (i32, i32) {
    %c0_i32 = arith.constant 0 : i32
    %c0_i32_0 = arith.constant 0 : i32
    return %arg0, %c0_i32 : i32, i32
  }
  func.func @transform_1(%arg0: i32) -> (i32, i32) {
    %c0_i32 = arith.constant 0 : i32
    %c0_i32_0 = arith.constant 0 : i32
    %c0_i32_1 = arith.constant 0 : i32
    return %c0_i32, %c0_i32_0 : i32, i32
  }
  func.func @transform_2(%arg0: i32) -> (i32, i32) {
    %c0_i32 = arith.constant 0 : i32
    %c0_i32_0 = arith.constant 0 : i32
    %c0_i32_1 = arith.constant 0 : i32
    return %c0_i32, %c0_i32_0 : i32, i32
  }
  func.func @transform_3(%arg0: i32) -> (i32, i32, i32) {
    %c0_i32 = arith.constant 0 : i32
    %c0_i32_0 = arith.constant 0 : i32
    %c0_i32_1 = arith.constant 0 : i32
    return %c0_i32, %arg0, %c0_i32_0 : i32, i32, i32
  }
}

module attributes {stable_mosaic.version = 11 : i64} {
  func.func @_split_linear_kernel(%arg0: i32, %arg1: memref<16x32xf32, #tpu.memory_space<vmem>>, %arg2: memref<32x96xf32, #tpu.memory_space<vmem>>, %arg3: memref<1x96xf32, #tpu.memory_space<vmem>>, %arg4: memref<3x16x32xf32, #tpu.memory_space<vmem>>) attributes {dimension_semantics = [#tpu.dimension_semantics<parallel>], iteration_bounds = array<i64: 1>, scalar_prefetch = 0 : i64, scratch_operands = 0 : i64, tpu.core_type = #tpu.core_type<tc>, window_params = [{transform_indices = @transform_0, window_bounds = array<i64: 16, 32>}, {pipeline_mode = #tpu.pipeline_mode<synchronous>, transform_indices = @transform_1, window_bounds = array<i64: 32, 96>}, {pipeline_mode = #tpu.pipeline_mode<synchronous>, transform_indices = @transform_2, window_bounds = array<i64: 1, 96>}, {transform_indices = @transform_3, window_bounds = array<i64: 3, 16, 32>}]} {
    %c0 = arith.constant 0 : index
    %c0_0 = arith.constant 0 : index
    %0 = vector.load %arg1[%c0, %c0_0] : memref<16x32xf32, #tpu.memory_space<vmem>>, vector<16x32xf32>
    %c0_1 = arith.constant 0 : index
    %c0_2 = arith.constant 0 : index
    %1 = vector.load %arg2[%c0_1, %c0_2] : memref<32x96xf32, #tpu.memory_space<vmem>>, vector<32x96xf32>
    %cst = arith.constant dense<0.000000e+00> : vector<16x96xf32>
    %2 = tpu.matmul %0, %1, %cst {dimension_numbers = #tpu.dot_dimension_numbers<[1], [0], [0], [1], [0, 0, 1, 1], [], []>} : vector<16x32xf32>, vector<32x96xf32>, vector<16x96xf32> -> vector<16x96xf32>
    %c0_3 = arith.constant 0 : index
    %c0_4 = arith.constant 0 : index
    %3 = vector.load %arg3[%c0_3, %c0_4] : memref<1x96xf32, #tpu.memory_space<vmem>>, vector<1x96xf32>
    %4 = vector.broadcast %3 : vector<1x96xf32> to vector<16x96xf32>
    %5 = arith.addf %2, %4 : vector<16x96xf32>
    %6 = vector.extract_strided_slice %5 {offsets = [0, 0], sizes = [16, 32], strides = [1, 1]} : vector<16x96xf32> to vector<16x32xf32>
    %c0_5 = arith.constant 0 : index
    %c0_6 = arith.constant 0 : index
    %c0_7 = arith.constant 0 : index
    %7 = vector.load %arg4[%c0_5, %c0_6, %c0_7] : memref<3x16x32xf32, #tpu.memory_space<vmem>>, vector<1x16x32xf32>
    %8 = vector.shape_cast %7 : vector<1x16x32xf32> to vector<16x32xf32>
    %9 = vector.shape_cast %6 : vector<16x32xf32> to vector<1x16x32xf32>
    tpu.vector_store %arg4[%c0_5, %c0_6, %c0_7], %9 {strides = array<i32>} : memref<3x16x32xf32, #tpu.memory_space<vmem>>, vector<1x16x32xf32>,
    %10 = vector.extract_strided_slice %5 {offsets = [0, 32], sizes = [16, 32], strides = [1, 1]} : vector<16x96xf32> to vector<16x32xf32>
    %c1 = arith.constant 1 : index
    %c0_8 = arith.constant 0 : index
    %c0_9 = arith.constant 0 : index
    %11 = vector.load %arg4[%c1, %c0_8, %c0_9] : memref<3x16x32xf32, #tpu.memory_space<vmem>>, vector<1x16x32xf32>
    %12 = vector.shape_cast %11 : vector<1x16x32xf32> to vector<16x32xf32>
    %13 = vector.shape_cast %10 : vector<16x32xf32> to vector<1x16x32xf32>
    tpu.vector_store %arg4[%c1, %c0_8, %c0_9], %13 {strides = array<i32>} : memref<3x16x32xf32, #tpu.memory_space<vmem>>, vector<1x16x32xf32>,
    %14 = vector.extract_strided_slice %5 {offsets = [0, 64], sizes = [16, 32], strides = [1, 1]} : vector<16x96xf32> to vector<16x32xf32>
    %c2 = arith.constant 2 : index
    %c0_10 = arith.constant 0 : index
    %c0_11 = arith.constant 0 : index
    %15 = vector.load %arg4[%c2, %c0_10, %c0_11] : memref<3x16x32xf32, #tpu.memory_space<vmem>>, vector<1x16x32xf32>
    %16 = vector.shape_cast %15 : vector<1x16x32xf32> to vector<16x32xf32>
    %17 = vector.shape_cast %14 : vector<16x32xf32> to vector<1x16x32xf32>
    tpu.vector_store %arg4[%c2, %c0_10, %c0_11], %17 {strides = array<i32>} : memref<3x16x32xf32, #tpu.memory_space<vmem>>, vector<1x16x32xf32>,
    return
  }
  func.func @transform_0(%arg0: i32) -> (i32, i32) {
    %c0_i32 = arith.constant 0 : i32
    %c0_i32_0 = arith.constant 0 : i32
    return %arg0, %c0_i32 : i32, i32
  }
  func.func @transform_1(%arg0: i32) -> (i32, i32) {
    %c0_i32 = arith.constant 0 : i32
    %c0_i32_0 = arith.constant 0 : i32
    %c0_i32_1 = arith.constant 0 : i32
    return %c0_i32, %c0_i32_0 : i32, i32
  }
  func.func @transform_2(%arg0: i32) -> (i32, i32) {
    %c0_i32 = arith.constant 0 : i32
    %c0_i32_0 = arith.constant 0 : i32
    %c0_i32_1 = arith.constant 0 : i32
    return %c0_i32, %c0_i32_0 : i32, i32
  }
  func.func @transform_3(%arg0: i32) -> (i32, i32, i32) {
    %c0_i32 = arith.constant 0 : i32
    %c0_i32_0 = arith.constant 0 : i32
    %c0_i32_1 = arith.constant 0 : i32
    return %c0_i32, %arg0, %c0_i32_0 : i32, i32, i32
  }
}

</mosaic_0001>

<llo_original>
// kernel: tpu_custom_call.1
$region0: #{tpu_custom_call.1}
  #allocation0 [shape = 'u32[]', space=smem, size = 0x4, offset = 0x4, fixed_abs, tag = 'smem constant byte address 0x4 - core index']
  #allocation1 [shape = 'u32[144,128]{1,0:T(1,128)}', space=vmem, size = 0x12000, scoped, tag = 'internal scratch']
  %s0 = inlined_call_operand.hbm [shape: f32[16,32], index: 0, kind: input, shape index: {}]
  %s1 = inlined_call_operand.hbm [shape: f32[32,96], index: 1, kind: input, shape index: {}]
  %s2 = inlined_call_operand.vmem [shape: f32[1,96], index: 2, kind: input, shape index: {}]
  %s3 = inlined_call_operand.hbm [shape: f32[3,16,32], index: 3, kind: output, shape index: {}]
  %s4 = sld [smem:[#allocation0]]
  $region30: #{tpu_custom_call.1} parent=0
    _
  %s6 = ssub.s32 1, %s4
  %s7 = scalar_select 0, %s6, %s4
  $region1: #{tpu_custom_call.1} parent=0
    #allocation2 [shape = 'u8[8192]{0}', space=vmem, size = 0x2000, scoped, tag = 'input window, operand 0, single buffered']
    #allocation3 [shape = 's32[1]{0}', space=sflag, size = 0x4, scoped, tag = 'scoped memory for tpu_custom_call.1']
    #allocation4 [shape = 's32[1]{0}', space=sflag, size = 0x4, scoped, tag = 'scoped memory for tpu_custom_call.1']
    #allocation5 [shape = 'u8[16384]{0}', space=vmem, size = 0x4000, scoped, tag = 'input window, operand 1, single buffered']
    #allocation6 [shape = 's32[1]{0}', space=sflag, size = 0x4, scoped, tag = 'scoped memory for tpu_custom_call.1']
    #allocation7 [shape = 'u8[24576]{0}', space=vmem, size = 0x6000, scoped, tag = 'output window, operand 0, single buffered']
    %8 = vsyncpa [#allocation3], 0
    %9 = vsyncpa [#allocation6], 0
    %10 = vsyncpa [#allocation4], 0
    // Predicated region
    $region2: #{tpu_custom_call.1} parent=1 // pred_check
      _
    $region3: #{tpu_custom_call.1} parent=1 // pred_check_branch
      %12 = sbr.rel (0) target = $region5
    $region4: #{tpu_custom_call.1} parent=1 // pred_region
      %s14 = ssub.s32 256, 256
      %15 = vsyncadd [#allocation3], %s14
      %s16 = sshll.u32 [#allocation2], 4
      %s17 = int_to_ptr.vmem [resolvable:$true] %s16
      %22 = dma.hbm_to_vmem [thread:$0]  %s0, 256, %s17, [#allocation3], 128, 128, 8
    $region5: #{tpu_custom_call.1} parent=1 // pred_fallthru
      _
    // Predicated region
    $region6: #{tpu_custom_call.1} parent=1 // pred_check
      _
    $region7: #{tpu_custom_call.1} parent=1 // pred_check_branch
      %24 = sbr.rel (0) target = $region9
    $region8: #{tpu_custom_call.1} parent=1 // pred_region
      %s26 = ssub.s32 512, 512
      %27 = vsyncadd [#allocation6], %s26
      %s28 = sshll.u32 [#allocation5], 4
      %s29 = int_to_ptr.vmem [resolvable:$true] %s28
      %34 = dma.hbm_to_vmem [thread:$0]  %s1, 512, %s29, [#allocation6], 128, 128, 8
    $region9: #{tpu_custom_call.1} parent=1 // pred_fallthru
      _
    // Predicated region
    $region10: #{tpu_custom_call.1} parent=1 // pred_check
      _
    $region11: #{tpu_custom_call.1} parent=1 // pred_check_branch
      %36 = sbr.rel (0) target = $region13
    $region12: #{tpu_custom_call.1} parent=1 // pred_region
      _
    $region13: #{tpu_custom_call.1} parent=1 // pred_fallthru
      _
    // Predicated region
    $region14: #{tpu_custom_call.1} parent=1 // pred_check
      _
    $region15: #{tpu_custom_call.1} parent=1 // pred_check_branch
      %38 = sbr.rel (0) target = $region17
    $region16: #{tpu_custom_call.1} parent=1 // pred_region
      %39 = dma.done [#allocation3], 256
    $region17: #{tpu_custom_call.1} parent=1 // pred_fallthru
      _
    // Predicated region
    $region18: #{tpu_custom_call.1} parent=1 // pred_check
      _
    $region19: #{tpu_custom_call.1} parent=1 // pred_check_branch
      %41 = sbr.rel (0) target = $region21
    $region20: #{tpu_custom_call.1} parent=1 // pred_region
      %42 = dma.done [#allocation6], 512
    $region21: #{tpu_custom_call.1} parent=1 // pred_fallthru
      _
    %v43 = vld [vmem:[#allocation2] sm:$0xff]
    %v44 = vld [vmem:[#allocation2 + $0x8] sm:$0xff]
    %v45 = vld [vmem:[#allocation5] sm:$0xff]
    %v46 = vld [vmem:[#allocation5 + $0x8] sm:$0xff]
    %v47 = vld [vmem:[#allocation5 + $0x10] sm:$0xff]
    %v48 = vld [vmem:[#allocation5 + $0x18] sm:$0xff]
    %v49 = vld [vmem:[%s2] sm:$0x1]
    %v51 = vlaneseq
    %v52 = vshrl.u32 %v51, 7
    %v53 = vsub.s32 0, %v52
    %v54 = vrot.slane %v49, %v53
    %vm56 = vcmask 261120
    %v58 = vsel %vm56, %v43, 0
    %v61 = vsel %vm56, %v44, 0
    %63 = vmatprep.subr.mxu0 0.0
    %64 = vmatpush1.msra.mxu0 0.0
    %65 = vmatprep.subr.mxu0 0.0
    %66 = vmatpush1.msra.mxu0 0.0
    %67 = vmatprep.subr.mxu0 0.0
    %68 = vmatpush1.msra.mxu0 0.0
    %69 = vmatprep.subr.mxu0 0.0
    %70 = vmatpush1.msra.mxu0 0.0
    %71 = vmatprep.subr.mxu0 0.0
    %72 = vmatpush1.msra.mxu0 0.0
    %73 = vmatprep.subr.mxu0 0.0
    %74 = vmatpush1.msra.mxu0 0.0
    %75 = vmatprep.subr.mxu0 0.0
    %76 = vmatpush1.msra.mxu0 0.0
    %77 = vmatprep.subr.mxu0 0.0
    %78 = vmatpush1.msra.mxu0 0.0
    %79 = vmatprep.subr.mxu0 0.0
    %80 = vmatpush1.msra.mxu0 0.0
    %81 = vmatprep.subr.mxu0 0.0
    %82 = vmatpush1.msra.mxu0 0.0
    %83 = vmatprep.subr.mxu0 0.0
    %84 = vmatpush1.msra.mxu0 0.0
    %85 = vmatprep.subr.mxu0 0.0
    %86 = vmatpush1.msra.mxu0 0.0
    %87 = vmatprep.subr.mxu0 0.0
    %88 = vmatpush1.msra.mxu0 %v48
    %89 = vmatprep.subr.mxu0 0.0
    %90 = vmatpush1.msra.mxu0 %v47
    %91 = vmatprep.subr.mxu0 0.0
    %92 = vmatpush1.msra.mxu0 %v46
    %93 = vmatprep.subr.mxu0 0.0
    %94 = vmatpush1.msra.mxu0 %v45
    %95 = vmatprep.subr.mxu0 0.0
    %96 = vmatpush2.msra.mxu0 0.0
    %97 = vmatprep.subr.mxu0 0.0
    %98 = vmatpush2.msra.mxu0 0.0
    %99 = vmatprep.subr.mxu0 0.0
    %100 = vmatpush2.msra.mxu0 0.0
    %101 = vmatprep.subr.mxu0 0.0
    %102 = vmatpush2.msra.mxu0 0.0
    %103 = vmatprep.subr.mxu0 0.0
    %104 = vmatpush2.msra.mxu0 0.0
    %105 = vmatprep.subr.mxu0 0.0
    %106 = vmatpush2.msra.mxu0 0.0
    %107 = vmatprep.subr.mxu0 0.0
    %108 = vmatpush2.msra.mxu0 0.0
    %109 = vmatprep.subr.mxu0 0.0
    %110 = vmatpush2.msra.mxu0 0.0
    %111 = vmatprep.subr.mxu0 0.0
    %112 = vmatpush2.msra.mxu0 0.0
    %113 = vmatprep.subr.mxu0 0.0
    %114 = vmatpush2.msra.mxu0 0.0
    %115 = vmatprep.subr.mxu0 0.0
    %116 = vmatpush2.msra.mxu0 0.0
    %117 = vmatprep.subr.mxu0 0.0
    %118 = vmatpush2.msra.mxu0 0.0
    %119 = vmatprep.subr.mxu0 0.0
    %120 = vmatpush2.msra.mxu0 0.0
    %121 = vmatprep.subr.mxu0 0.0
    %122 = vmatpush2.msra.mxu0 0.0
    %123 = vmatprep.subr.mxu0 0.0
    %124 = vmatpush2.msra.mxu0 0.0
    %125 = vmatprep.subr.mxu0 0.0
    %126 = vmatpush2.msra.mxu0 0.0
    %127 = vmatprep.mubr.f32.mxu0 0.0
    %128 = vmatmul.mubr.f32.gmra.mxu0 %v58
    %v129 = vpop.f32.mrf.mxu0
    %v130 = vadd.f32 %v54, %v129
    %v131 = vpop.f32.mrf.mxu0
    %132 = vmatprep.mubr.f32.mxu0 0.0
    %133 = vmatmul.mubr.f32.gmra.mxu0 %v61
    %v134 = vpop.f32.mrf.mxu0
    %v135 = vadd.f32 %v54, %v134
    %v136 = vpop.f32.mrf.mxu0
    %137 = vdwg.mxu0
    %138 = vst.msk [vmem:[#allocation7] sm:$0xff] %vm56, %v130
    %139 = vst.msk [vmem:[#allocation7 + $0x8] sm:$0xff] %vm56, %v135
    %142 = vrot.lane.b32.xlu0 %v130, 96
    %v143 = vpop.permute.xlu0 %142
    %144 = vrot.lane.b32.xlu0 %v135, 96
    %v145 = vpop.permute.xlu0 %144
    %s148 = scalar_lea.vmem [#allocation7], 16
    %149 = vst.msk [vmem:[%s148] sm:$0xff] %vm56, %v143
    %150 = vst.msk [vmem:[%s148 + $0x8] sm:$0xff] %vm56, %v145
    %151 = vrot.lane.b32.xlu0 %v130, 64
    %v152 = vpop.permute.xlu0 %151
    %153 = vrot.lane.b32.xlu0 %v135, 64
    %v154 = vpop.permute.xlu0 %153
    %s157 = scalar_lea.vmem [#allocation7], 32
    %158 = vst.msk [vmem:[%s157] sm:$0xff] %vm56, %v152
    %159 = vst.msk [vmem:[%s157 + $0x8] sm:$0xff] %vm56, %v154
    // Predicated region
    $region22: #{tpu_custom_call.1} parent=1 // pred_check
      _
    $region23: #{tpu_custom_call.1} parent=1 // pred_check_branch
      %161 = sbr.rel (0) target = $region25
    $region24: #{tpu_custom_call.1} parent=1 // pred_region
      %s163 = ssub.s32 768, 768
      %164 = vsyncadd [#allocation4], %s163
      %s165 = sshll.u32 [#allocation7], 4
      %s166 = int_to_ptr.vmem [resolvable:$true] %s165
      %171 = dma.vmem_to_hbm [thread:$0]  %s166, 768, %s3, [#allocation4], 128, 128, 8
    $region25: #{tpu_custom_call.1} parent=1 // pred_fallthru
      _
    // Predicated region
    $region26: #{tpu_custom_call.1} parent=1 // pred_check
      _
    $region27: #{tpu_custom_call.1} parent=1 // pred_check_branch
      %173 = sbr.rel (0) target = $region29
    $region28: #{tpu_custom_call.1} parent=1 // pred_region
      %174 = dma.done [#allocation4], 768
    $region29: #{tpu_custom_call.1} parent=1 // pred_fallthru
      _
    %175 = vsyncpa [#allocation3], 1
    %176 = vsyncpa [#allocation6], 1
    %177 = vsyncpa [#allocation4], 1

// kernel: tpu_custom_call.1
$region0: #{tpu_custom_call.1}
  #allocation0 [shape = 'u32[]', space=smem, size = 0x4, offset = 0x4, fixed_abs, tag = 'smem constant byte address 0x4 - core index']
  #allocation1 [shape = 'u32[144,128]{1,0:T(1,128)}', space=vmem, size = 0x12000, scoped, tag = 'internal scratch']
  %s0 = inlined_call_operand.hbm [shape: f32[16,32], index: 0, kind: input, shape index: {}]
  %s1 = inlined_call_operand.hbm [shape: f32[32,96], index: 1, kind: input, shape index: {}]
  %s2 = inlined_call_operand.vmem [shape: f32[1,96], index: 2, kind: input, shape index: {}]
  %s3 = inlined_call_operand.hbm [shape: f32[3,16,32], index: 3, kind: output, shape index: {}]
  %s4 = sld [smem:[#allocation0]]
  $region30: #{tpu_custom_call.1} parent=0
    _
  %s6 = ssub.s32 1, %s4
  %s7 = scalar_select 0, %s6, %s4
  $region1: #{tpu_custom_call.1} parent=0
    #allocation2 [shape = 'u8[8192]{0}', space=vmem, size = 0x2000, scoped, tag = 'input window, operand 0, single buffered']
    #allocation3 [shape = 's32[1]{0}', space=sflag, size = 0x4, scoped, tag = 'scoped memory for tpu_custom_call.1']
    #allocation4 [shape = 's32[1]{0}', space=sflag, size = 0x4, scoped, tag = 'scoped memory for tpu_custom_call.1']
    #allocation5 [shape = 'u8[16384]{0}', space=vmem, size = 0x4000, scoped, tag = 'input window, operand 1, single buffered']
    #allocation6 [shape = 's32[1]{0}', space=sflag, size = 0x4, scoped, tag = 'scoped memory for tpu_custom_call.1']
    #allocation7 [shape = 'u8[24576]{0}', space=vmem, size = 0x6000, scoped, tag = 'output window, operand 0, single buffered']
    %8 = vsyncpa [#allocation3], 0
    %9 = vsyncpa [#allocation6], 0
    %10 = vsyncpa [#allocation4], 0
    // Predicated region
    $region2: #{tpu_custom_call.1} parent=1 // pred_check
      _
    $region3: #{tpu_custom_call.1} parent=1 // pred_check_branch
      %12 = sbr.rel (0) target = $region5
    $region4: #{tpu_custom_call.1} parent=1 // pred_region
      %s14 = ssub.s32 256, 256
      %15 = vsyncadd [#allocation3], %s14
      %s16 = sshll.u32 [#allocation2], 4
      %s17 = int_to_ptr.vmem [resolvable:$true] %s16
      %22 = dma.hbm_to_vmem [thread:$0]  %s0, 256, %s17, [#allocation3], 128, 128, 8
    $region5: #{tpu_custom_call.1} parent=1 // pred_fallthru
      _
    // Predicated region
    $region6: #{tpu_custom_call.1} parent=1 // pred_check
      _
    $region7: #{tpu_custom_call.1} parent=1 // pred_check_branch
      %24 = sbr.rel (0) target = $region9
    $region8: #{tpu_custom_call.1} parent=1 // pred_region
      %s26 = ssub.s32 512, 512
      %27 = vsyncadd [#allocation6], %s26
      %s28 = sshll.u32 [#allocation5], 4
      %s29 = int_to_ptr.vmem [resolvable:$true] %s28
      %34 = dma.hbm_to_vmem [thread:$0]  %s1, 512, %s29, [#allocation6], 128, 128, 8
    $region9: #{tpu_custom_call.1} parent=1 // pred_fallthru
      _
    // Predicated region
    $region10: #{tpu_custom_call.1} parent=1 // pred_check
      _
    $region11: #{tpu_custom_call.1} parent=1 // pred_check_branch
      %36 = sbr.rel (0) target = $region13
    $region12: #{tpu_custom_call.1} parent=1 // pred_region
      _
    $region13: #{tpu_custom_call.1} parent=1 // pred_fallthru
      _
    // Predicated region
    $region14: #{tpu_custom_call.1} parent=1 // pred_check
      _
    $region15: #{tpu_custom_call.1} parent=1 // pred_check_branch
      %38 = sbr.rel (0) target = $region17
    $region16: #{tpu_custom_call.1} parent=1 // pred_region
      %39 = dma.done [#allocation3], 256
    $region17: #{tpu_custom_call.1} parent=1 // pred_fallthru
      _
    // Predicated region
    $region18: #{tpu_custom_call.1} parent=1 // pred_check
      _
    $region19: #{tpu_custom_call.1} parent=1 // pred_check_branch
      %41 = sbr.rel (0) target = $region21
    $region20: #{tpu_custom_call.1} parent=1 // pred_region
      %42 = dma.done [#allocation6], 512
    $region21: #{tpu_custom_call.1} parent=1 // pred_fallthru
      _
    %v43 = vld [vmem:[#allocation2] sm:$0xff]
    %v44 = vld [vmem:[#allocation2 + $0x8] sm:$0xff]
    %v45 = vld [vmem:[#allocation5] sm:$0xff]
    %v46 = vld [vmem:[#allocation5 + $0x8] sm:$0xff]
    %v47 = vld [vmem:[#allocation5 + $0x10] sm:$0xff]
    %v48 = vld [vmem:[#allocation5 + $0x18] sm:$0xff]
    %v49 = vld [vmem:[%s2] sm:$0x1]
    %v51 = vlaneseq
    %v52 = vshrl.u32 %v51, 7
    %v53 = vsub.s32 0, %v52
    %v54 = vrot.slane %v49, %v53
    %vm56 = vcmask 261120
    %v58 = vsel %vm56, %v43, 0
    %v61 = vsel %vm56, %v44, 0
    %63 = vmatprep.subr.mxu0 0.0
    %64 = vmatpush1.msra.mxu0 0.0
    %65 = vmatprep.subr.mxu0 0.0
    %66 = vmatpush1.msra.mxu0 0.0
    %67 = vmatprep.subr.mxu0 0.0
    %68 = vmatpush1.msra.mxu0 0.0
    %69 = vmatprep.subr.mxu0 0.0
    %70 = vmatpush1.msra.mxu0 0.0
    %71 = vmatprep.subr.mxu0 0.0
    %72 = vmatpush1.msra.mxu0 0.0
    %73 = vmatprep.subr.mxu0 0.0
    %74 = vmatpush1.msra.mxu0 0.0
    %75 = vmatprep.subr.mxu0 0.0
    %76 = vmatpush1.msra.mxu0 0.0
    %77 = vmatprep.subr.mxu0 0.0
    %78 = vmatpush1.msra.mxu0 0.0
    %79 = vmatprep.subr.mxu0 0.0
    %80 = vmatpush1.msra.mxu0 0.0
    %81 = vmatprep.subr.mxu0 0.0
    %82 = vmatpush1.msra.mxu0 0.0
    %83 = vmatprep.subr.mxu0 0.0
    %84 = vmatpush1.msra.mxu0 0.0
    %85 = vmatprep.subr.mxu0 0.0
    %86 = vmatpush1.msra.mxu0 0.0
    %87 = vmatprep.subr.mxu0 0.0
    %88 = vmatpush1.msra.mxu0 %v48
    %89 = vmatprep.subr.mxu0 0.0
    %90 = vmatpush1.msra.mxu0 %v47
    %91 = vmatprep.subr.mxu0 0.0
    %92 = vmatpush1.msra.mxu0 %v46
    %93 = vmatprep.subr.mxu0 0.0
    %94 = vmatpush1.msra.mxu0 %v45
    %95 = vmatprep.subr.mxu0 0.0
    %96 = vmatpush2.msra.mxu0 0.0
    %97 = vmatprep.subr.mxu0 0.0
    %98 = vmatpush2.msra.mxu0 0.0
    %99 = vmatprep.subr.mxu0 0.0
    %100 = vmatpush2.msra.mxu0 0.0
    %101 = vmatprep.subr.mxu0 0.0
    %102 = vmatpush2.msra.mxu0 0.0
    %103 = vmatprep.subr.mxu0 0.0
    %104 = vmatpush2.msra.mxu0 0.0
    %105 = vmatprep.subr.mxu0 0.0
    %106 = vmatpush2.msra.mxu0 0.0
    %107 = vmatprep.subr.mxu0 0.0
    %108 = vmatpush2.msra.mxu0 0.0
    %109 = vmatprep.subr.mxu0 0.0
    %110 = vmatpush2.msra.mxu0 0.0
    %111 = vmatprep.subr.mxu0 0.0
    %112 = vmatpush2.msra.mxu0 0.0
    %113 = vmatprep.subr.mxu0 0.0
    %114 = vmatpush2.msra.mxu0 0.0
    %115 = vmatprep.subr.mxu0 0.0
    %116 = vmatpush2.msra.mxu0 0.0
    %117 = vmatprep.subr.mxu0 0.0
    %118 = vmatpush2.msra.mxu0 0.0
    %119 = vmatprep.subr.mxu0 0.0
    %120 = vmatpush2.msra.mxu0 0.0
    %121 = vmatprep.subr.mxu0 0.0
    %122 = vmatpush2.msra.mxu0 0.0
    %123 = vmatprep.subr.mxu0 0.0
    %124 = vmatpush2.msra.mxu0 0.0
    %125 = vmatprep.subr.mxu0 0.0
    %126 = vmatpush2.msra.mxu0 0.0
    %127 = vmatprep.mubr.f32.mxu0 0.0
    %128 = vmatmul.mubr.f32.gmra.mxu0 %v58
    %v129 = vpop.f32.mrf.mxu0
    %v130 = vadd.f32 %v54, %v129
    %v131 = vpop.f32.mrf.mxu0
    %132 = vmatprep.mubr.f32.mxu0 0.0
    %133 = vmatmul.mubr.f32.gmra.mxu0 %v61
    %v134 = vpop.f32.mrf.mxu0
    %v135 = vadd.f32 %v54, %v134
    %v136 = vpop.f32.mrf.mxu0
    %137 = vdwg.mxu0
    %138 = vst.msk [vmem:[#allocation7] sm:$0xff] %vm56, %v130
    %139 = vst.msk [vmem:[#allocation7 + $0x8] sm:$0xff] %vm56, %v135
    %142 = vrot.lane.b32.xlu0 %v130, 96
    %v143 = vpop.permute.xlu0 %142
    %144 = vrot.lane.b32.xlu0 %v135, 96
    %v145 = vpop.permute.xlu0 %144
    %s148 = scalar_lea.vmem [#allocation7], 16
    %149 = vst.msk [vmem:[%s148] sm:$0xff] %vm56, %v143
    %150 = vst.msk [vmem:[%s148 + $0x8] sm:$0xff] %vm56, %v145
    %151 = vrot.lane.b32.xlu0 %v130, 64
    %v152 = vpop.permute.xlu0 %151
    %153 = vrot.lane.b32.xlu0 %v135, 64
    %v154 = vpop.permute.xlu0 %153
    %s157 = scalar_lea.vmem [#allocation7], 32
    %158 = vst.msk [vmem:[%s157] sm:$0xff] %vm56, %v152
    %159 = vst.msk [vmem:[%s157 + $0x8] sm:$0xff] %vm56, %v154
    // Predicated region
    $region22: #{tpu_custom_call.1} parent=1 // pred_check
      _
    $region23: #{tpu_custom_call.1} parent=1 // pred_check_branch
      %161 = sbr.rel (0) target = $region25
    $region24: #{tpu_custom_call.1} parent=1 // pred_region
      %s163 = ssub.s32 768, 768
      %164 = vsyncadd [#allocation4], %s163
      %s165 = sshll.u32 [#allocation7], 4
      %s166 = int_to_ptr.vmem [resolvable:$true] %s165
      %171 = dma.vmem_to_hbm [thread:$0]  %s166, 768, %s3, [#allocation4], 128, 128, 8
    $region25: #{tpu_custom_call.1} parent=1 // pred_fallthru
      _
    // Predicated region
    $region26: #{tpu_custom_call.1} parent=1 // pred_check
      _
    $region27: #{tpu_custom_call.1} parent=1 // pred_check_branch
      %173 = sbr.rel (0) target = $region29
    $region28: #{tpu_custom_call.1} parent=1 // pred_region
      %174 = dma.done [#allocation4], 768
    $region29: #{tpu_custom_call.1} parent=1 // pred_fallthru
      _
    %175 = vsyncpa [#allocation3], 1
    %176 = vsyncpa [#allocation6], 1
    %177 = vsyncpa [#allocation4], 1

</llo_original>
